<compile_context>
chip_gen: v7x
topology: tpu7x:2x2x1
jax: 0.10.0
libtpu: 0.0.40
codegen_flags: <defaults>
</compile_context>

<pallas_src>
import jax
import jax.numpy as jnp
import numpy as np
from jax.experimental import pallas as pl
from jax.experimental.pallas import tpu as pltpu


def _add_bias_kernel(g_ref, b_ref, o_ref):
    # g_ref / o_ref: (Cb, X, Y2),  b_ref: (Cb, X-2, Y2-4),  Y2 = 2*Y
    g = g_ref[...]
    b = b_ref[...]
    cb, xb, yb2 = b.shape          # static block shape
    y2 = yb2 + 4

    # Build the zero-padded bias entirely in registers (pad 2 lanes on each
    # side of the fused Y*2 axis, 1 sublane row on each side of X), then do a
    # single full-width unmasked store of the whole output tile.
    zcol = jnp.zeros((cb, xb, 2), dtype=b.dtype)
    b_y = jnp.concatenate([zcol, b, zcol], axis=2)        # (Cb, X-2, Y2)
    zrow = jnp.zeros((cb, 1, y2), dtype=b.dtype)
    b_xy = jnp.concatenate([zrow, b_y, zrow], axis=1)     # (Cb, X,   Y2)

    o_ref[...] = g + b_xy


def add_bias_to_grid(grid_cxy2, bias_cxy2, *, target_block_bytes=1 << 20):
    """grid: (C, X, Y, 2), bias: (C, X-2, Y-2, 2). Returns (C, X, Y, 2)."""
    C, X, Y, two = grid_cxy2.shape
    assert two == 2 and X > 2 and Y > 2
    assert bias_cxy2.shape == (C, X - 2, Y - 2, 2)

    Y2 = 2 * Y
    YB2 = 2 * (Y - 2)
    itemsize = jnp.dtype(grid_cxy2.dtype).itemsize
    per_chan_grid_bytes = X * Y2 * itemsize

    # Channel blocking: aim for ~target_block_bytes per grid-input buffer,
    # capped at C, and force Cb to divide C so every block is full.
    cb = int(max(1, min(C, target_block_bytes // per_chan_grid_bytes)))
    while C % cb != 0:
        cb -= 1
    steps = pl.cdiv(C, cb)
    # (On v7x, >=2 grid steps lets dimension_semantics spread channel blocks
    #  across the 2 TensorCores; at the module's tiny shapes 1 step is best.)

    # Free, contiguous reshapes (layout plumbing only; no transpose, no copy).
    grid_r = grid_cxy2.reshape(C, X, Y2)
    bias_r = bias_cxy2.reshape(C, X - 2, YB2)

    # VMEM budget: double-buffered grid-in, bias-in, out blocks.  Cap at 48 MiB
    # so the same tiling stays within v7x's 64 MiB physical VMEM.
    gblk = cb * per_chan_grid_bytes
    bblk = cb * (X - 2) * YB2 * itemsize
    live = 2 * (2 * gblk + bblk)
    vmem_limit = int(min(48 * 1024 * 1024, max(16 * 1024 * 1024, 4 * live)))

    out_r = pl.pallas_call(
        _add_bias_kernel,
        out_shape=jax.ShapeDtypeStruct((C, X, Y2), grid_cxy2.dtype),
        grid_spec=pltpu.PrefetchScalarGridSpec(
            num_scalar_prefetch=0,
            grid=(steps,),
            in_specs=[
                pl.BlockSpec((cb, X, Y2), lambda c: (c, 0, 0)),
                pl.BlockSpec((cb, X - 2, YB2), lambda c: (c, 0, 0)),
            ],
            out_specs=pl.BlockSpec((cb, X, Y2), lambda c: (c, 0, 0)),
        ),
        compiler_params=pltpu.CompilerParams(
            dimension_semantics=("parallel",),
            vmem_limit_bytes=vmem_limit,
        ),
    )(grid_r, bias_r)

    return out_r.reshape(C, X, Y, 2)


if __name__ == "__main__":
    key = jax.random.PRNGKey(0)
    kg, kb = jax.random.split(key)

    C, X, Y = 4, 16, 16
    grid = jax.random.normal(kg, (C, X, Y, 2), dtype=jnp.float32)

    # The module initializes bias = zeros_like(grid[:, 1:-1, 1:-1, :]); use
    # non-zero values here so the padded add is actually exercised.
    bias = 0.1 * jax.random.normal(kb, (C, X - 2, Y - 2, 2), dtype=jnp.float32)

    out = jax.block_until_ready(add_bias_to_grid(grid, bias))

    # pure-JAX reference of the torch forward
    ref = grid + jnp.pad(bias, ((0, 0), (1, 1), (1, 1), (0, 0)))
    np.testing.assert_allclose(np.asarray(out), np.asarray(ref),
                               rtol=1e-6, atol=1e-6)
    print("KERNEL_OK")
</pallas_src>

<mosaic_0001>
module attributes {stable_mosaic.version = 11 : i64} {
  func.func @_add_bias_kernel(%arg0: i32, %arg1: memref<4x16x32xf32, #tpu.memory_space<vmem>>, %arg2: memref<4x14x28xf32, #tpu.memory_space<vmem>>, %arg3: memref<4x16x32xf32, #tpu.memory_space<vmem>>) attributes {dimension_semantics = [#tpu.dimension_semantics<parallel>], iteration_bounds = array<i64: 1>, scalar_prefetch = 0 : i64, scratch_operands = 0 : i64, tpu.core_type = #tpu.core_type<tc>, window_params = [{transform_indices = @transform_0, window_bounds = array<i64: 4, 16, 32>}, {transform_indices = @transform_1, window_bounds = array<i64: 4, 14, 28>}, {transform_indices = @transform_2, window_bounds = array<i64: 4, 16, 32>}]} {
    %c0 = arith.constant 0 : index
    %c0_0 = arith.constant 0 : index
    %c0_1 = arith.constant 0 : index
    %0 = vector.load %arg1[%c0, %c0_0, %c0_1] : memref<4x16x32xf32, #tpu.memory_space<vmem>>, vector<4x16x32xf32>
    %c0_2 = arith.constant 0 : index
    %c0_3 = arith.constant 0 : index
    %c0_4 = arith.constant 0 : index
    %1 = vector.load %arg2[%c0_2, %c0_3, %c0_4] : memref<4x14x28xf32, #tpu.memory_space<vmem>>, vector<4x14x28xf32>
    %cst = arith.constant 0.000000e+00 : f32
    %2 = vector.broadcast %cst : f32 to vector<4x14x2xf32>
    %3 = tpu.concatenate %2, %1, %2 in 2 : vector<4x14x2xf32>, vector<4x14x28xf32>, vector<4x14x2xf32> -> vector<4x14x32xf32>
    %cst_5 = arith.constant 0.000000e+00 : f32
    %4 = vector.broadcast %cst_5 : f32 to vector<4x1x32xf32>
    %5 = tpu.concatenate %4, %3, %4 in 1 : vector<4x1x32xf32>, vector<4x14x32xf32>, vector<4x1x32xf32> -> vector<4x16x32xf32>
    %6 = arith.addf %0, %5 : vector<4x16x32xf32>
    %c0_6 = arith.constant 0 : index
    %c0_7 = arith.constant 0 : index
    %c0_8 = arith.constant 0 : index
    %7 = vector.load %arg3[%c0_6, %c0_7, %c0_8] : memref<4x16x32xf32, #tpu.memory_space<vmem>>, vector<4x16x32xf32>
    tpu.vector_store %arg3[%c0_6, %c0_7, %c0_8], %6 {strides = array<i32>} : memref<4x16x32xf32, #tpu.memory_space<vmem>>, vector<4x16x32xf32>,
    return
  }
  func.func @transform_0(%arg0: i32) -> (i32, i32, i32) {
    %c0_i32 = arith.constant 0 : i32
    %c0_i32_0 = arith.constant 0 : i32
    %c0_i32_1 = arith.constant 0 : i32
    return %arg0, %c0_i32, %c0_i32_0 : i32, i32, i32
  }
  func.func @transform_1(%arg0: i32) -> (i32, i32, i32) {
    %c0_i32 = arith.constant 0 : i32
    %c0_i32_0 = arith.constant 0 : i32
    %c0_i32_1 = arith.constant 0 : i32
    return %arg0, %c0_i32, %c0_i32_0 : i32, i32, i32
  }
  func.func @transform_2(%arg0: i32) -> (i32, i32, i32) {
    %c0_i32 = arith.constant 0 : i32
    %c0_i32_0 = arith.constant 0 : i32
    %c0_i32_1 = arith.constant 0 : i32
    return %arg0, %c0_i32, %c0_i32_0 : i32, i32, i32
  }
}

</mosaic_0001>

<llo_original>
// kernel: tpu_custom_call.1
$region0: #{tpu_custom_call.1}
  #allocation0 [shape = 'u32[]', space=smem, size = 0x4, offset = 0x4, fixed_abs, tag = 'smem constant byte address 0x4 - core index']
  #allocation1 [shape = 'u32[144,128]{1,0:T(1,128)}', space=vmem, size = 0x12000, scoped, tag = 'internal scratch']
  %s0 = inlined_call_operand.vmem [shape: f32[4,16,32], index: 0, kind: input, shape index: {}]
  %s1 = inlined_call_operand.vmem [shape: f32[4,14,28], index: 1, kind: input, shape index: {}]
  %s2 = inlined_call_operand.hbm [shape: f32[4,16,32], index: 2, kind: output, shape index: {}]
  %s3 = sld [smem:[#allocation0]]
  $region18: #{tpu_custom_call.1} parent=0
    _
  %s5 = ssub.s32 1, %s3
  %s6 = scalar_select 0, %s5, %s3
  $region1: #{tpu_custom_call.1} parent=0
    #allocation2 [shape = 'u8[32768]{0}', space=vmem, size = 0x8000, scoped, tag = 'output window, operand 0, single buffered']
    #allocation3 [shape = 's32[1]{0}', space=sflag, size = 0x4, scoped, tag = 'scoped memory for tpu_custom_call.1']
    %7 = vsyncpa [#allocation3], 0
    // Predicated region
    $region2: #{tpu_custom_call.1} parent=1 // pred_check
      _
    $region3: #{tpu_custom_call.1} parent=1 // pred_check_branch
      %9 = sbr.rel (0) target = $region5
    $region4: #{tpu_custom_call.1} parent=1 // pred_region
      _
    $region5: #{tpu_custom_call.1} parent=1 // pred_fallthru
      _
    // Predicated region
    $region6: #{tpu_custom_call.1} parent=1 // pred_check
      _
    $region7: #{tpu_custom_call.1} parent=1 // pred_check_branch
      %11 = sbr.rel (0) target = $region9
    $region8: #{tpu_custom_call.1} parent=1 // pred_region
      _
    $region9: #{tpu_custom_call.1} parent=1 // pred_fallthru
      _
    %v12 = vld [vmem:[%s0] sm:$0xff]
    %v13 = vld [vmem:[%s0 + $0x8] sm:$0xff]
    %v14 = vld [vmem:[%s0 + $0x10] sm:$0xff]
    %v15 = vld [vmem:[%s0 + $0x18] sm:$0xff]
    %v16 = vld [vmem:[%s0 + $0x20] sm:$0xff]
    %v17 = vld [vmem:[%s0 + $0x28] sm:$0xff]
    %v18 = vld [vmem:[%s0 + $0x30] sm:$0xff]
    %v19 = vld [vmem:[%s0 + $0x38] sm:$0xff]
    %v20 = vld [vmem:[%s1] sm:$0xff]
    %v21 = vld [vmem:[%s1 + $0x8] sm:$0x3f]
    %v22 = vld [vmem:[%s1 + $0x10] sm:$0xff]
    %v23 = vld [vmem:[%s1 + $0x18] sm:$0x3f]
    %v24 = vld [vmem:[%s1 + $0x20] sm:$0xff]
    %v25 = vld [vmem:[%s1 + $0x28] sm:$0x3f]
    %v26 = vld [vmem:[%s1 + $0x30] sm:$0xff]
    %v27 = vld [vmem:[%s1 + $0x38] sm:$0x3f]
    %36 = vrot.lane.b32.xlu0 %v20, 2
    %v37 = vpop.permute.xlu0 %36
    %38 = vrot.lane.b32.xlu0 %v21, 2
    %v39 = vpop.permute.xlu0 %38
    %40 = vrot.lane.b32.xlu0 %v22, 2
    %v41 = vpop.permute.xlu0 %40
    %42 = vrot.lane.b32.xlu0 %v23, 2
    %v43 = vpop.permute.xlu0 %42
    %44 = vrot.lane.b32.xlu0 %v24, 2
    %v45 = vpop.permute.xlu0 %44
    %46 = vrot.lane.b32.xlu0 %v25, 2
    %v47 = vpop.permute.xlu0 %46
    %48 = vrot.lane.b32.xlu0 %v26, 2
    %v49 = vpop.permute.xlu0 %48
    %50 = vrot.lane.b32.xlu0 %v27, 2
    %v51 = vpop.permute.xlu0 %50
    %vm60 = vcmask 15360
    %v61 = vsel %vm60, 0.0, %v37
    %v62 = vsel %vm60, 0.0, %v39
    %v63 = vsel %vm60, 0.0, %v41
    %v64 = vsel %vm60, 0.0, %v43
    %v65 = vsel %vm60, 0.0, %v45
    %v66 = vsel %vm60, 0.0, %v47
    %v67 = vsel %vm60, 0.0, %v49
    %v68 = vsel %vm60, 0.0, %v51
    %vm69 = vcmask 244736
    %v70 = vsel %vm69, %v61, 0.0
    %v71 = vsel %vm69, %v62, 0.0
    %v72 = vsel %vm69, %v63, 0.0
    %v73 = vsel %vm69, %v64, 0.0
    %v74 = vsel %vm69, %v65, 0.0
    %v75 = vsel %vm69, %v66, 0.0
    %v76 = vsel %vm69, %v67, 0.0
    %v77 = vsel %vm69, %v68, 0.0
    %vm86 = vcmask 1040384
    %v87 = vrot.slane %v70, 7
    %v88 = vrot.slane %v71, 7
    %v89 = vsel %vm86, %v87, %v88
    %v90 = vrot.slane %v72, 7
    %v91 = vrot.slane %v73, 7
    %v92 = vsel %vm86, %v90, %v91
    %v93 = vrot.slane %v74, 7
    %v94 = vrot.slane %v75, 7
    %v95 = vsel %vm86, %v93, %v94
    %v96 = vrot.slane %v76, 7
    %v97 = vrot.slane %v77, 7
    %v98 = vsel %vm86, %v96, %v97
    %v107 = vsel %vm86, 0.0, %v87
    %v108 = vsel %vm86, 0.0, %v90
    %v109 = vsel %vm86, 0.0, %v93
    %v110 = vsel %vm86, 0.0, %v96
    %vm111 = vcmask 1046528
    %v112 = vsel %vm111, %v89, 0.0
    %v113 = vsel %vm111, %v92, 0.0
    %v114 = vsel %vm111, %v95, 0.0
    %v115 = vsel %vm111, %v98, 0.0
    %v116 = vadd.f32 %v12, %v107
    %v117 = vadd.f32 %v13, %v112
    %v118 = vadd.f32 %v14, %v108
    %v119 = vadd.f32 %v15, %v113
    %v120 = vadd.f32 %v16, %v109
    %v121 = vadd.f32 %v17, %v114
    %v122 = vadd.f32 %v18, %v110
    %v123 = vadd.f32 %v19, %v115
    %vm124 = vcmask 261120
    %125 = vst.msk [vmem:[#allocation2] sm:$0xff] %vm124, %v116
    %126 = vst.msk [vmem:[#allocation2 + $0x8] sm:$0xff] %vm124, %v117
    %127 = vst.msk [vmem:[#allocation2 + $0x10] sm:$0xff] %vm124, %v118
    %128 = vst.msk [vmem:[#allocation2 + $0x18] sm:$0xff] %vm124, %v119
    %129 = vst.msk [vmem:[#allocation2 + $0x20] sm:$0xff] %vm124, %v120
    %130 = vst.msk [vmem:[#allocation2 + $0x28] sm:$0xff] %vm124, %v121
    %131 = vst.msk [vmem:[#allocation2 + $0x30] sm:$0xff] %vm124, %v122
    %132 = vst.msk [vmem:[#allocation2 + $0x38] sm:$0xff] %vm124, %v123
    // Predicated region
    $region10: #{tpu_custom_call.1} parent=1 // pred_check
      _
    $region11: #{tpu_custom_call.1} parent=1 // pred_check_branch
      %134 = sbr.rel (0) target = $region13
    $region12: #{tpu_custom_call.1} parent=1 // pred_region
      %s136 = ssub.s32 1024, 1024
      %137 = vsyncadd [#allocation3], %s136
      %s138 = sshll.u32 [#allocation2], 4
      %s139 = int_to_ptr.vmem [resolvable:$true] %s138
      %144 = dma.vmem_to_hbm [thread:$0]  %s139, 1024, %s2, [#allocation3], 128, 128, 8
    $region13: #{tpu_custom_call.1} parent=1 // pred_fallthru
      _
    // Predicated region
    $region14: #{tpu_custom_call.1} parent=1 // pred_check
      _
    $region15: #{tpu_custom_call.1} parent=1 // pred_check_branch
      %146 = sbr.rel (0) target = $region17
    $region16: #{tpu_custom_call.1} parent=1 // pred_region
      %147 = dma.done [#allocation3], 1024
    $region17: #{tpu_custom_call.1} parent=1 // pred_fallthru
      _
    %148 = vsyncpa [#allocation3], 1

</llo_original>
